<compile_context>
chip_gen: v6e
topology: v6e:2x2x1
jax: 0.10.0
libtpu: 0.0.40
codegen_flags: <defaults>
</compile_context>

<pallas_src>
import functools

import jax
import jax.numpy as jnp
import numpy as np
from jax.experimental import pallas as pl
from jax.experimental.pallas import tpu as pltpu


def _round_up(x, m):
    return (x + m - 1) // m * m


def _preemphasis_kernel(x_ref, prev_ref, o_ref, *, coeff):
    """One (TB, TT) tile of y[t] = x[t] - coeff * x[t-1]."""
    x = x_ref[...]                                   # (TB, TT), native dtype
    # prev[:, k] = x[:, k-1] for k >= 1; lane 0 wraps and is fixed up below.
    prev = pltpu.roll(x, shift=1, axis=1)
    o_ref[...] = (x - coeff * prev).astype(o_ref.dtype)
    # Column 0: previous sample across the tile/row boundary (gathered in the
    # wrapper; 'reflect' sample x[:, 1] for the very first sample of a row).
    prev0 = prev_ref[0]                              # (TB, 1)
    o_ref[:, 0:1] = (x[:, 0:1] - coeff * prev0).astype(o_ref.dtype)


def preemphasis(x, coefficient=0.97, *, block_b=8, block_t=65536):
    """Pallas TPU implementation of PreEmphasis.forward for a (B, T) batch."""
    assert x.ndim == 2, "PreEmphasis expects a 2-D (batch, time) input"
    B, T = x.shape
    assert T >= 2, "reflect padding of 1 needs at least 2 samples"
    assert block_b % 8 == 0 and block_t % 128 == 0

    # ---- sublane packing for small batches: (B, T) -> (B*G, T/G) -----------
    G = 1
    if B < 8:
        for g in range(8 // B, 1, -1):
            if T % g == 0:
                G = g
                break
    Bp, Tp = B * G, T // G
    xp = x.reshape(Bp, Tp)                           # free row-major reshape

    # ---- tile selection (HBM-bandwidth bound; VMEM-budgeted) ---------------
    itemsize = jnp.dtype(x.dtype).itemsize
    TB = min(block_b, _round_up(Bp, 8))
    # Double-buffered in + out ~= 4 * TB * TT * itemsize; keep under ~12 MiB so
    # it fits v5e's 16 MiB default scoped VMEM (and v7x's 64 MiB physical).
    vmem_budget = 12 * 1024 * 1024
    tt_cap = max(128, (vmem_budget // (4 * TB * itemsize)) // 128 * 128)
    TT = min(block_t, _round_up(Tp, 128), tt_cap)
    grid = (pl.cdiv(Bp, TB), pl.cdiv(Tp, TT))
    n_t = grid[1]

    # ---- boundary samples: x[., tile_start - 1] ('reflect' -> x[., 1]) -----
    g_idx = np.arange(G)[:, None]                    # packed-row offset in a batch row
    j_idx = np.arange(n_t)[None, :]                  # time-tile index
    starts = g_idx * Tp + j_idx * TT                 # tile starts, original flat coords
    prev_pos = np.where(starts == 0, 1, starts - 1)  # left 'reflect' pad of 1
    prev_bound = jnp.take(x, jnp.asarray(prev_pos.reshape(-1)), axis=1)   # (B, G*n_t)
    prev_bound = prev_bound.reshape(Bp, n_t).T[:, :, None]                # (n_t, Bp, 1)

    out = pl.pallas_call(
        functools.partial(_preemphasis_kernel, coeff=float(coefficient)),
        out_shape=jax.ShapeDtypeStruct((Bp, Tp), x.dtype),
        grid=grid,
        in_specs=[
            pl.BlockSpec((TB, TT), lambda i, j: (i, j)),
            pl.BlockSpec((1, TB, 1), lambda i, j: (j, i, 0)),
        ],
        out_specs=pl.BlockSpec((TB, TT), lambda i, j: (i, j)),
        compiler_params=pltpu.CompilerParams(
            # No cross-iteration state -> both axes shardable across TCs (v7x).
            dimension_semantics=("parallel", "parallel")),
        cost_estimate=pl.CostEstimate(
            flops=2 * Bp * Tp,
            bytes_accessed=2 * Bp * Tp * itemsize,
            transcendentals=0),
    )(xp, prev_bound)
    return out.reshape(B, T)


def preemphasis_ref(x, coefficient=0.97):
    """Pure-JAX reference (identical math to the PyTorch module)."""
    prev = jnp.concatenate([x[:, 1:2], x[:, :-1]], axis=1)
    return x - coefficient * prev


if __name__ == "__main__":
    key = jax.random.PRNGKey(0)

    # Small batch of raw-audio rows (exercises the B<8 sublane-packing path).
    B, T = 2, 400
    x = jax.random.normal(key, (B, T), jnp.float32)
    y = jax.block_until_ready(jax.jit(preemphasis)(x))
    assert y.shape == (B, T) and y.dtype == jnp.float32
    assert bool(jnp.all(jnp.isfinite(y)))
    assert bool(jnp.allclose(y, preemphasis_ref(x), atol=1e-5, rtol=1e-5))

    # Multi-tile time axis + ragged edges + packing with G=2.
    x2 = jax.random.normal(jax.random.PRNGKey(1), (3, 1000), jnp.float32)
    y2 = jax.block_until_ready(jax.jit(functools.partial(preemphasis, block_t=128))(x2))
    assert bool(jnp.allclose(y2, preemphasis_ref(x2), atol=1e-5, rtol=1e-5))

    # No-packing path (B == 8) with several time tiles and a ragged last tile.
    x3 = jax.random.normal(jax.random.PRNGKey(2), (8, 1000), jnp.float32)
    y3 = jax.block_until_ready(jax.jit(functools.partial(preemphasis, block_t=256))(x3))
    assert bool(jnp.allclose(y3, preemphasis_ref(x3), atol=1e-5, rtol=1e-5))

    print("KERNEL_OK")
</pallas_src>

<mosaic_0001>
module attributes {stable_mosaic.version = 11 : i64} {
  func.func @_preemphasis_kernel(%arg0: i32, %arg1: i32, %arg2: memref<8x128xf32, #tpu.memory_space<vmem>>, %arg3: memref<1x8x1xf32, #tpu.memory_space<vmem>>, %arg4: memref<8x128xf32, #tpu.memory_space<vmem>>) attributes {dimension_semantics = [#tpu.dimension_semantics<parallel>, #tpu.dimension_semantics<parallel>], iteration_bounds = array<i64: 1, 1>, scalar_prefetch = 0 : i64, scratch_operands = 0 : i64, tpu.core_type = #tpu.core_type<tc>, window_params = [{transform_indices = @transform_0, window_bounds = array<i64: 8, 128>}, {transform_indices = @transform_1, window_bounds = array<i64: 1, 8, 1>}, {transform_indices = @transform_2, window_bounds = array<i64: 8, 128>}]} {
    %c0 = arith.constant 0 : index
    %c0_0 = arith.constant 0 : index
    %0 = vector.load %arg2[%c0, %c0_0] : memref<8x128xf32, #tpu.memory_space<vmem>>, vector<8x128xf32>
    %c1_i32 = arith.constant 1 : i32
    %1 = tpu.dynamic_rotate %0 by %c1_i32 dim 1 : vector<8x128xf32>, i32 -> vector<8x128xf32>
    %cst = arith.constant 9.700000e-01 : f32
    %2 = vector.broadcast %cst : f32 to vector<8x128xf32>
    %3 = arith.mulf %2, %1 : vector<8x128xf32>
    %4 = arith.subf %0, %3 : vector<8x128xf32>
    %c0_1 = arith.constant 0 : index
    %c0_2 = arith.constant 0 : index
    %5 = vector.load %arg4[%c0_1, %c0_2] : memref<8x128xf32, #tpu.memory_space<vmem>>, vector<8x128xf32>
    tpu.vector_store %arg4[%c0_1, %c0_2], %4 {strides = array<i32>} : memref<8x128xf32, #tpu.memory_space<vmem>>, vector<8x128xf32>,
    %c0_3 = arith.constant 0 : index
    %c0_4 = arith.constant 0 : index
    %c0_5 = arith.constant 0 : index
    %6 = vector.load %arg3[%c0_3, %c0_4, %c0_5] : memref<1x8x1xf32, #tpu.memory_space<vmem>>, vector<1x8x1xf32>
    %7 = vector.shape_cast %6 : vector<1x8x1xf32> to vector<8x1xf32>
    %8 = vector.extract_strided_slice %0 {offsets = [0, 0], sizes = [8, 1], strides = [1, 1]} : vector<8x128xf32> to vector<8x1xf32>
    %cst_6 = arith.constant 9.700000e-01 : f32
    %9 = vector.broadcast %cst_6 : f32 to vector<8x1xf32>
    %10 = arith.mulf %9, %7 : vector<8x1xf32>
    %11 = arith.subf %8, %10 : vector<8x1xf32>
    %c0_7 = arith.constant 0 : index
    %c0_8 = arith.constant 0 : index
    %12 = vector.load %arg4[%c0_7, %c0_8] : memref<8x128xf32, #tpu.memory_space<vmem>>, vector<8x1xf32>
    tpu.vector_store %arg4[%c0_7, %c0_8], %11 {strides = array<i32>} : memref<8x128xf32, #tpu.memory_space<vmem>>, vector<8x1xf32>,
    return
  }
  func.func @transform_0(%arg0: i32, %arg1: i32) -> (i32, i32) {
    %c0_i32 = arith.constant 0 : i32
    return %arg0, %arg1 : i32, i32
  }
  func.func @transform_1(%arg0: i32, %arg1: i32) -> (i32, i32, i32) {
    %c0_i32 = arith.constant 0 : i32
    %c0_i32_0 = arith.constant 0 : i32
    return %arg1, %arg0, %c0_i32 : i32, i32, i32
  }
  func.func @transform_2(%arg0: i32, %arg1: i32) -> (i32, i32) {
    %c0_i32 = arith.constant 0 : i32
    return %arg0, %arg1 : i32, i32
  }
}

</mosaic_0001>

<llo_original>
// kernel: preemphasis.1
$region0: #{preemphasis.1}
  #allocation0 [shape = 'u32[]', space=smem, size = 0x4, offset = 0x4, fixed_abs, tag = 'smem constant byte address 0x4 - core index']
  #allocation1 [shape = 'u32[144,128]{1,0:T(1,128)}', space=vmem, size = 0x12000, scoped, tag = 'internal scratch']
  %s0 = inlined_call_operand.vmem [shape: f32[8,100], index: 0, kind: input, shape index: {}]
  %s1 = inlined_call_operand.vmem [shape: f32[1,8,1], index: 1, kind: input, shape index: {}]
  %s2 = inlined_call_operand.vmem [shape: f32[8,100], index: 2, kind: output, shape index: {}]
  %s3 = sld [smem:[#allocation0]]
  $region18: #{preemphasis.1} parent=0
    _
  %s5 = ssub.s32 1, %s3
  %s6 = scalar_select 0, %s5, %s3
  // Predicated region
  $region2: #{preemphasis.1} parent=0 // pred_check
    _
  $region3: #{preemphasis.1} parent=0 // pred_check_branch
    %8 = sbr.rel (0) target = $region5
  $region4: #{preemphasis.1} parent=0 // pred_region
    _
  $region5: #{preemphasis.1} parent=0 // pred_fallthru
    _
  // Predicated region
  $region6: #{preemphasis.1} parent=0 // pred_check
    _
  $region7: #{preemphasis.1} parent=0 // pred_check_branch
    %10 = sbr.rel (0) target = $region9
  $region8: #{preemphasis.1} parent=0 // pred_region
    _
  $region9: #{preemphasis.1} parent=0 // pred_fallthru
    _
  %v11 = vld [vmem:[%s0] sm:$0xff]
  %12 = vrot.lane.b32.xlu0 %v11, 1
  %v13 = vpop.permute.xlu0 %12
  %v14 = vmul.f32 %v13, 0.97
  %v15 = vsub.f32 %v11, %v14
  %16 = vst [vmem:[%s2] sm:$0xff] %v15
  %v17 = vld [vmem:[%s1] sm:$0xff]
  %v18 = vmul.f32 %v17, 0.97
  %v19 = vsub.f32 %v11, %v18
  %vm20 = vcmask 7168
  %21 = vst.msk [vmem:[%s2] sm:$0xff] %vm20, %v19
  // Predicated region
  $region10: #{preemphasis.1} parent=0 // pred_check
    _
  $region11: #{preemphasis.1} parent=0 // pred_check_branch
    %23 = sbr.rel (0) target = $region13
  $region12: #{preemphasis.1} parent=0 // pred_region
    _
  $region13: #{preemphasis.1} parent=0 // pred_fallthru
    _
  // Predicated region
  $region14: #{preemphasis.1} parent=0 // pred_check
    _
  $region15: #{preemphasis.1} parent=0 // pred_check_branch
    %25 = sbr.rel (0) target = $region17
  $region16: #{preemphasis.1} parent=0 // pred_region
    _
  $region17: #{preemphasis.1} parent=0 // pred_fallthru
    _

</llo_original>
